<compile_context>
chip_gen: v7x
topology: tpu7x:2x2x1
jax: 0.10.0
libtpu: 0.0.40
codegen_flags: <defaults>
</compile_context>

<pallas_src>
import jax
import jax.numpy as jnp
from jax.experimental import pallas as pl
from jax.experimental.pallas import tpu as pltpu

_LANES = 128
_BLOCK_BYTES = 1 << 20  # ~1 MiB per block: at the measured HBM-roofline knee.


def _relu_kernel(x_ref, o_ref):
    # Elementwise max(0, x) on the current VMEM tile (pure VPU op; the kernel
    # is DMA-bound, so compute cost is irrelevant).
    x = x_ref[...]
    o_ref[...] = jnp.maximum(x, jnp.zeros((), dtype=x.dtype))


def _tile_rows_for(dtype, rows: int) -> int:
    """Rows per block: ~_BLOCK_BYTES per block, multiple of 32 sublanes."""
    itemsize = jnp.dtype(dtype).itemsize
    tr = max(32, (_BLOCK_BYTES // (_LANES * itemsize)) // 32 * 32)
    # Don't exceed the slab (rounded up to keep the 32-sublane multiple).
    return min(tr, pl.cdiv(rows, 32) * 32)


def _relu_2d(slab: jax.Array) -> jax.Array:
    """Run the kernel over a lane-dense (rows, 128) slab."""
    rows, lanes = slab.shape
    tr = _tile_rows_for(slab.dtype, rows)
    grid = (pl.cdiv(rows, tr),)
    return pl.pallas_call(
        _relu_kernel,
        out_shape=jax.ShapeDtypeStruct((rows, lanes), slab.dtype),
        grid_spec=pltpu.PrefetchScalarGridSpec(
            num_scalar_prefetch=0,
            grid=grid,
            in_specs=[pl.BlockSpec((tr, lanes), lambda i: (i, 0))],
            out_specs=pl.BlockSpec((tr, lanes), lambda i: (i, 0)),
        ),
        compiler_params=pltpu.CompilerParams(
            dimension_semantics=("parallel",),
        ),
    )(slab)


def relu(x: jax.Array) -> jax.Array:
    """ReLU(x) = max(0, x); same shape/dtype as input (matches F.relu)."""
    # TODO(synk): PyTorch's `inplace=True` (buffer donation) has no in-kernel
    # meaning here; donation is handled by the caller's jit donate_argnums.
    orig_shape = x.shape
    n = x.size
    if n == 0:
        return x

    if n % _LANES == 0:
        # Fast path: reshape is metadata-only; no padding, no final slice.
        slab = x.reshape(n // _LANES, _LANES)
        return _relu_2d(slab).reshape(orig_shape)

    # Ragged fallback: one lane-pad pass, then slice the tail off.
    n_pad = pl.cdiv(n, _LANES) * _LANES
    flat = jnp.pad(jnp.ravel(x), (0, n_pad - n))
    out = _relu_2d(flat.reshape(n_pad // _LANES, _LANES))
    return out.reshape(-1)[:n].reshape(orig_shape)


if __name__ == "__main__":
    key = jax.random.PRNGKey(0)
    # Small NCHW-style input consistent with the (N, *) shape contract.
    x = jax.random.normal(key, (2, 4, 16, 16), dtype=jnp.float32)

    y = jax.block_until_ready(relu(x))

    # Correctness check against plain JAX reference.
    y_ref = jnp.maximum(x, 0.0)
    assert y.shape == x.shape and y.dtype == x.dtype
    assert bool(jnp.all(y == y_ref))

    # bf16 path (dtype-aware block sizing).
    xb = jax.random.normal(jax.random.PRNGKey(2), (2, 8, 32), dtype=jnp.bfloat16)
    yb = jax.block_until_ready(relu(xb))
    assert yb.dtype == jnp.bfloat16
    assert bool(jnp.all(yb == jnp.maximum(xb, jnp.bfloat16(0))))

    # Ragged (non-128-divisible) fallback path.
    x2 = jax.random.normal(jax.random.PRNGKey(1), (3, 5, 7), dtype=jnp.float32)
    y2 = jax.block_until_ready(relu(x2))
    assert bool(jnp.all(y2 == jnp.maximum(x2, 0.0)))

    print("KERNEL_OK")
</pallas_src>

<mosaic_0001>
module attributes {stable_mosaic.version = 11 : i64} {
  func.func @_relu_kernel(%arg0: i32, %arg1: memref<32x128xf32, #tpu.memory_space<vmem>>, %arg2: memref<32x128xf32, #tpu.memory_space<vmem>>) attributes {dimension_semantics = [#tpu.dimension_semantics<parallel>], iteration_bounds = array<i64: 1>, scalar_prefetch = 0 : i64, scratch_operands = 0 : i64, tpu.core_type = #tpu.core_type<tc>, window_params = [{transform_indices = @transform_0, window_bounds = array<i64: 32, 128>}, {transform_indices = @transform_1, window_bounds = array<i64: 32, 128>}]} {
    %c0 = arith.constant 0 : index
    %c0_0 = arith.constant 0 : index
    %0 = vector.load %arg1[%c0, %c0_0] : memref<32x128xf32, #tpu.memory_space<vmem>>, vector<32x128xf32>
    %cst = arith.constant 0.000000e+00 : f32
    %1 = vector.broadcast %cst : f32 to vector<32x128xf32>
    %2 = arith.maximumf %0, %1 : vector<32x128xf32>
    %c0_1 = arith.constant 0 : index
    %c0_2 = arith.constant 0 : index
    %3 = vector.load %arg2[%c0_1, %c0_2] : memref<32x128xf32, #tpu.memory_space<vmem>>, vector<32x128xf32>
    tpu.vector_store %arg2[%c0_1, %c0_2], %2 {strides = array<i32>} : memref<32x128xf32, #tpu.memory_space<vmem>>, vector<32x128xf32>,
    return
  }
  func.func @transform_0(%arg0: i32) -> (i32, i32) {
    %c0_i32 = arith.constant 0 : i32
    %c0_i32_0 = arith.constant 0 : i32
    return %arg0, %c0_i32 : i32, i32
  }
  func.func @transform_1(%arg0: i32) -> (i32, i32) {
    %c0_i32 = arith.constant 0 : i32
    %c0_i32_0 = arith.constant 0 : i32
    return %arg0, %c0_i32 : i32, i32
  }
}

</mosaic_0001>

<llo_original>
// kernel: tpu_custom_call.1
$region0: #{tpu_custom_call.1}
  #allocation0 [shape = 'u32[]', space=smem, size = 0x4, offset = 0x4, fixed_abs, tag = 'smem constant byte address 0x4 - core index']
  #allocation1 [shape = 'u32[144,128]{1,0:T(1,128)}', space=vmem, size = 0x12000, scoped, tag = 'internal scratch']
  %s0 = inlined_call_operand.hbm [shape: f32[16,128], index: 0, kind: input, shape index: {}]
  %s1 = inlined_call_operand.hbm [shape: f32[16,128], index: 1, kind: output, shape index: {}]
  %s2 = sld [smem:[#allocation0]]
  $region18: #{tpu_custom_call.1} parent=0
    _
  %s4 = ssub.s32 1, %s2
  %s5 = scalar_select 0, %s4, %s2
  $region1: #{tpu_custom_call.1} parent=0
    #allocation2 [shape = 'u8[16384]{0}', space=vmem, size = 0x4000, scoped, tag = 'input window, operand 0, single buffered']
    #allocation3 [shape = 's32[1]{0}', space=sflag, size = 0x4, scoped, tag = 'scoped memory for tpu_custom_call.1']
    #allocation4 [shape = 's32[1]{0}', space=sflag, size = 0x4, scoped, tag = 'scoped memory for tpu_custom_call.1']
    #allocation5 [shape = 'u8[16384]{0}', space=vmem, size = 0x4000, scoped, tag = 'output window, operand 0, single buffered']
    %6 = vsyncpa [#allocation3], 0
    %7 = vsyncpa [#allocation4], 0
    // Predicated region
    $region2: #{tpu_custom_call.1} parent=1 // pred_check
      _
    $region3: #{tpu_custom_call.1} parent=1 // pred_check_branch
      %9 = sbr.rel (0) target = $region5
    $region4: #{tpu_custom_call.1} parent=1 // pred_region
      %s11 = ssub.s32 512, 256
      %12 = vsyncadd [#allocation3], %s11
      %s13 = sshll.u32 [#allocation2], 4
      %s14 = int_to_ptr.vmem [resolvable:$true] %s13
      %19 = dma.hbm_to_vmem [thread:$0]  %s0, 256, %s14, [#allocation3], 128, 128, 8
    $region5: #{tpu_custom_call.1} parent=1 // pred_fallthru
      _
    // Predicated region
    $region6: #{tpu_custom_call.1} parent=1 // pred_check
      _
    $region7: #{tpu_custom_call.1} parent=1 // pred_check_branch
      %21 = sbr.rel (0) target = $region9
    $region8: #{tpu_custom_call.1} parent=1 // pred_region
      %22 = dma.done [#allocation3], 512
    $region9: #{tpu_custom_call.1} parent=1 // pred_fallthru
      _
    %v23 = vld [vmem:[#allocation2] sm:$0xff]
    %v24 = vld [vmem:[#allocation2 + $0x8] sm:$0xff]
    %v25 = vld [vmem:[#allocation2 + $0x10] sm:$0xff]
    %v26 = vld [vmem:[#allocation2 + $0x18] sm:$0xff]
    %v27 = vmax.f32 %v23, 0.0
    %v28 = vmax.f32 %v24, 0.0
    %v29 = vmax.f32 %v25, 0.0
    %v30 = vmax.f32 %v26, 0.0
    %31 = vst [vmem:[#allocation5] sm:$0xff] %v27
    %32 = vst [vmem:[#allocation5 + $0x8] sm:$0xff] %v28
    %33 = vst [vmem:[#allocation5 + $0x10] sm:$0xff] %v29
    %34 = vst [vmem:[#allocation5 + $0x18] sm:$0xff] %v30
    // Predicated region
    $region10: #{tpu_custom_call.1} parent=1 // pred_check
      _
    $region11: #{tpu_custom_call.1} parent=1 // pred_check_branch
      %36 = sbr.rel (0) target = $region13
    $region12: #{tpu_custom_call.1} parent=1 // pred_region
      %s38 = ssub.s32 512, 256
      %39 = vsyncadd [#allocation4], %s38
      %s40 = sshll.u32 [#allocation5], 4
      %s41 = int_to_ptr.vmem [resolvable:$true] %s40
      %46 = dma.vmem_to_hbm [thread:$0]  %s41, 256, %s1, [#allocation4], 128, 128, 8
    $region13: #{tpu_custom_call.1} parent=1 // pred_fallthru
      _
    // Predicated region
    $region14: #{tpu_custom_call.1} parent=1 // pred_check
      _
    $region15: #{tpu_custom_call.1} parent=1 // pred_check_branch
      %48 = sbr.rel (0) target = $region17
    $region16: #{tpu_custom_call.1} parent=1 // pred_region
      %49 = dma.done [#allocation4], 512
    $region17: #{tpu_custom_call.1} parent=1 // pred_fallthru
      _
    %50 = vsyncpa [#allocation3], 1
    %51 = vsyncpa [#allocation4], 1

</llo_original>
